<compile_context>
chip_gen: v5e
topology: v5e:2x2
jax: 0.10.0
libtpu: 0.0.40
codegen_flags: <defaults>
</compile_context>

<pallas_src>
import math

import jax
import jax.numpy as jnp
from jax import lax
from jax.experimental import pallas as pl
from jax.experimental.pallas import tpu as pltpu

# ---- model config (small, consistent with the module) ----
BATCH = 2
SEQ = 8
HIDDEN = 256
NUM_HEADS = 2
HEAD_DIM = HIDDEN // NUM_HEADS          # 128 -> lane-aligned
MAX_POS = 64
ROPE_BASE = 10000.0


def _attention_kernel(x_ref, mask_ref, cos_ref, sin_ref, wqkv_ref, wo_ref, o_ref):
    # x_ref:    (B*S, H)      bf16 hidden states, batch folded into rows
    # mask_ref: (B*S, B*S)    f32 block-diagonal additive mask
    # cos_ref:  (B*S, D)      f32 rotary cos gathered per (batch, position)
    # sin_ref:  (B*S, D)      f32 rotary sin with rotate_half's sign pre-baked
    # wqkv_ref: (H, 3H)       bf16 fused [Wq | Wk | Wv], pre-transposed (x @ W)
    # wo_ref:   (H, H)        bf16 output projection, pre-transposed
    x = x_ref[...]                                  # (BS, H) bf16
    mask = mask_ref[...]                            # (BS, BS) f32
    cos = cos_ref[...]                              # (BS, D) f32
    sin = sin_ref[...]                              # (BS, D) f32 (signed)

    # Fused QKV projection: one MXU push, B folded into M, f32 accumulation.
    qkv = jnp.dot(x, wqkv_ref[...], preferred_element_type=jnp.float32)  # (BS, 3H)

    # Hoist the V-half f32->bf16 cast out of the head loop (cast once).
    v_bf = qkv[:, 2 * HIDDEN:3 * HIDDEN].astype(jnp.bfloat16)            # (BS, H)

    scale = 1.0 / math.sqrt(HEAD_DIM)
    neg_min = jnp.finfo(jnp.float32).min

    ctx_heads = []
    for h in range(NUM_HEADS):                      # static unrolled loop
        lo = h * HEAD_DIM
        qh = qkv[:, lo:lo + HEAD_DIM]               # (BS, D) f32, lane-aligned slice
        kh = qkv[:, HIDDEN + lo:HIDDEN + lo + HEAD_DIM]

        # RoPE: rotate_half(x) == roll(x, D/2) * sign, sign baked into sin.
        # Positive axis index (last axis of a 2-D tile) required by pltpu.roll.
        qh = qh * cos + pltpu.roll(qh, HEAD_DIM // 2, axis=1) * sin
        kh = kh * cos + pltpu.roll(kh, HEAD_DIM // 2, axis=1) * sin

        # Attention scores over all B*S rows; the block-diagonal mask zeroes
        # cross-batch probabilities after softmax.  bf16 MXU, f32 accumulate.
        s = lax.dot_general(
            qh.astype(jnp.bfloat16), kh.astype(jnp.bfloat16),
            (((1,), (1,)), ((), ())),
            preferred_element_type=jnp.float32) * scale                  # (BS, BS)
        s = s + mask
        s = jnp.maximum(s, neg_min)

        # Numerically stable softmax in f32; exact reciprocal on the EUP slot.
        s = s - jnp.max(s, axis=-1, keepdims=True)
        p = jnp.exp(s)
        p = p * pl.reciprocal(jnp.sum(p, axis=-1, keepdims=True), approx=False)

        ctx = jnp.dot(p.astype(jnp.bfloat16), v_bf[:, lo:lo + HEAD_DIM],
                      preferred_element_type=jnp.float32)                # (BS, D)
        ctx_heads.append(ctx.astype(jnp.bfloat16))

    # Lane-concat at a 128-lane boundary (pure vreg placement), then one o_proj
    # matmul against the full Wo -> lane-dense (last dim = HIDDEN) store.
    ctx_full = jnp.concatenate(ctx_heads, axis=-1)                       # (BS, H) bf16
    out = jnp.dot(ctx_full, wo_ref[...], preferred_element_type=jnp.float32)
    o_ref[...] = out.astype(o_ref.dtype)


def llama_attention_pallas(hidden_states, attention_mask, position_ids, params):
    """hidden_states: (B, S, H) f32; attention_mask: (B, 1, S, S) additive;
    position_ids: (B, S) int32; params: dict of q/k/v/o weights (out, in)."""
    B, S, H = hidden_states.shape
    BS = B * S

    # --- rotary tables (LlamaRotaryEmbedding) — glue in plain JAX ---
    inv_freq = 1.0 / (ROPE_BASE ** (jnp.arange(0, HEAD_DIM, 2, dtype=jnp.float32) / HEAD_DIM))
    t = jnp.arange(MAX_POS, dtype=jnp.float32)
    freqs = jnp.einsum("i,j->ij", t, inv_freq)             # (MAX_POS, D/2)
    emb = jnp.concatenate((freqs, freqs), axis=-1)          # (MAX_POS, D)
    cos = jnp.cos(emb)[position_ids].reshape(BS, HEAD_DIM)  # per-batch positions OK
    sin = jnp.sin(emb)[position_ids].reshape(BS, HEAD_DIM)
    # Bake rotate_half's sign into sin: rotate_half(x) = roll(x, D/2) * sign.
    sign = jnp.concatenate([-jnp.ones((HEAD_DIM // 2,), jnp.float32),
                            jnp.ones((HEAD_DIM // 2,), jnp.float32)])
    sin_signed = (sin * sign).astype(jnp.float32)
    cos = cos.astype(jnp.float32)

    # Block-diagonal additive mask over the batch-folded rows: within-batch
    # blocks carry the module's attention_mask, cross-batch entries are
    # finfo.min (-> exactly zero probability after softmax).
    neg_min = jnp.finfo(jnp.float32).min
    mask_big = jnp.full((BS, BS), neg_min, dtype=jnp.float32)
    for b in range(B):
        mask_big = mask_big.at[b * S:(b + 1) * S, b * S:(b + 1) * S].set(
            attention_mask[b, 0].astype(jnp.float32))

    # Fused QKV weight: nn.Linear weight is (out, in); kernel uses x @ W^T.
    w_qkv = jnp.concatenate(
        [params["q"].T, params["k"].T, params["v"].T], axis=1).astype(jnp.bfloat16)
    wo = params["o"].T.astype(jnp.bfloat16)

    x_flat = hidden_states.reshape(BS, H).astype(jnp.bfloat16)

    out_flat = pl.pallas_call(
        _attention_kernel,
        out_shape=jax.ShapeDtypeStruct((BS, H), hidden_states.dtype),
        grid=(1,),                                           # single step: launch/overhead-bound regime
        in_specs=[
            pl.BlockSpec((BS, H), lambda i: (0, 0)),          # x (batch folded into rows)
            pl.BlockSpec((BS, BS), lambda i: (0, 0)),         # block-diagonal mask
            pl.BlockSpec((BS, HEAD_DIM), lambda i: (0, 0)),   # cos
            pl.BlockSpec((BS, HEAD_DIM), lambda i: (0, 0)),   # sin (signed)
            pl.BlockSpec((H, 3 * H), lambda i: (0, 0)),       # fused wqkv
            pl.BlockSpec((H, H), lambda i: (0, 0)),           # wo
        ],
        out_specs=pl.BlockSpec((BS, H), lambda i: (0, 0)),
        compiler_params=pltpu.CompilerParams(
            dimension_semantics=("arbitrary",)),
    )(x_flat, mask_big, cos, sin_signed, w_qkv, wo)

    # use_cache=False, output_attentions=False paths.
    return out_flat.reshape(B, S, H), None, None


# ---- pure-JAX f32 reference (mirrors the PyTorch forward) ----
def llama_attention_ref(hidden_states, attention_mask, position_ids, params):
    B, S, H = hidden_states.shape
    inv_freq = 1.0 / (ROPE_BASE ** (jnp.arange(0, HEAD_DIM, 2, dtype=jnp.float32) / HEAD_DIM))
    t = jnp.arange(MAX_POS, dtype=jnp.float32)
    freqs = jnp.einsum("i,j->ij", t, inv_freq)
    emb = jnp.concatenate((freqs, freqs), axis=-1)
    cos = jnp.cos(emb)[position_ids][:, None]             # (B,1,S,HEAD_DIM)
    sin = jnp.sin(emb)[position_ids][:, None]

    def proj(w):
        return (hidden_states @ w.T).reshape(B, S, NUM_HEADS, HEAD_DIM).transpose(0, 2, 1, 3)

    q = proj(params["q"])
    k = proj(params["k"])
    v = proj(params["v"])

    def rot_half(x):
        half = x.shape[-1] // 2
        return jnp.concatenate((-x[..., half:], x[..., :half]), axis=-1)

    q = q * cos + rot_half(q) * sin
    k = k * cos + rot_half(k) * sin

    w = jnp.einsum("bhqd,bhkd->bhqk", q, k) / math.sqrt(HEAD_DIM)
    w = w + attention_mask
    w = jnp.maximum(w, jnp.finfo(jnp.float32).min)
    w = jax.nn.softmax(w.astype(jnp.float32), axis=-1).astype(q.dtype)
    o = jnp.einsum("bhqk,bhkd->bhqd", w, v)
    o = o.transpose(0, 2, 1, 3).reshape(B, S, H)
    return o @ params["o"].T


if __name__ == "__main__":
    key = jax.random.PRNGKey(0)
    k_x, k_q, k_k, k_v, k_o = jax.random.split(key, 5)

    hidden_states = jax.random.normal(k_x, (BATCH, SEQ, HIDDEN), dtype=jnp.float32)
    params = {
        "q": jax.random.normal(k_q, (HIDDEN, HIDDEN), dtype=jnp.float32) * 0.02,
        "k": jax.random.normal(k_k, (HIDDEN, HIDDEN), dtype=jnp.float32) * 0.02,
        "v": jax.random.normal(k_v, (HIDDEN, HIDDEN), dtype=jnp.float32) * 0.02,
        "o": jax.random.normal(k_o, (HIDDEN, HIDDEN), dtype=jnp.float32) * 0.02,
    }
    position_ids = jnp.broadcast_to(jnp.arange(SEQ, dtype=jnp.int32), (BATCH, SEQ))

    # causal additive mask (B, 1, S, S): 0 where allowed, finfo.min where masked
    causal = jnp.tril(jnp.ones((SEQ, SEQ), dtype=bool))
    attention_mask = jnp.where(causal, 0.0, jnp.finfo(jnp.float32).min)
    attention_mask = jnp.broadcast_to(attention_mask, (BATCH, 1, SEQ, SEQ))

    out, attn_w, past_kv = llama_attention_pallas(
        hidden_states, attention_mask, position_ids, params)
    out = jax.block_until_ready(out)

    ref = llama_attention_ref(hidden_states, attention_mask, position_ids, params)
    assert out.shape == (BATCH, SEQ, HIDDEN)
    # Kernel runs MXU matmuls with bf16 inputs (f32 accumulate); tolerance is
    # loosened accordingly vs. the pure-f32 reference.
    assert jnp.allclose(out, ref, atol=2e-2, rtol=2e-2), "mismatch vs reference"

    print("KERNEL_OK")
</pallas_src>

<mosaic_0001>
module attributes {stable_mosaic.version = 11 : i64} {
  func.func @_attention_kernel(%arg0: i32, %arg1: memref<16x256xbf16, #tpu.memory_space<vmem>>, %arg2: memref<16x16xf32, #tpu.memory_space<vmem>>, %arg3: memref<16x128xf32, #tpu.memory_space<vmem>>, %arg4: memref<16x128xf32, #tpu.memory_space<vmem>>, %arg5: memref<256x768xbf16, #tpu.memory_space<vmem>>, %arg6: memref<256x256xbf16, #tpu.memory_space<vmem>>, %arg7: memref<16x256xf32, #tpu.memory_space<vmem>>) attributes {dimension_semantics = [#tpu.dimension_semantics<arbitrary>], iteration_bounds = array<i64: 1>, scalar_prefetch = 0 : i64, scratch_operands = 0 : i64, tpu.core_type = #tpu.core_type<tc>, window_params = [{pipeline_mode = #tpu.pipeline_mode<synchronous>, transform_indices = @transform_0, window_bounds = array<i64: 16, 256>}, {pipeline_mode = #tpu.pipeline_mode<synchronous>, transform_indices = @transform_1, window_bounds = array<i64: 16, 16>}, {pipeline_mode = #tpu.pipeline_mode<synchronous>, transform_indices = @transform_2, window_bounds = array<i64: 16, 128>}, {pipeline_mode = #tpu.pipeline_mode<synchronous>, transform_indices = @transform_3, window_bounds = array<i64: 16, 128>}, {pipeline_mode = #tpu.pipeline_mode<synchronous>, transform_indices = @transform_4, window_bounds = array<i64: 256, 768>}, {pipeline_mode = #tpu.pipeline_mode<synchronous>, transform_indices = @transform_5, window_bounds = array<i64: 256, 256>}, {pipeline_mode = #tpu.pipeline_mode<synchronous>, transform_indices = @transform_6, window_bounds = array<i64: 16, 256>}]} {
    %c0 = arith.constant 0 : index
    %c0_0 = arith.constant 0 : index
    %0 = vector.load %arg1[%c0, %c0_0] : memref<16x256xbf16, #tpu.memory_space<vmem>>, vector<16x256xbf16>
    %c0_1 = arith.constant 0 : index
    %c0_2 = arith.constant 0 : index
    %1 = vector.load %arg2[%c0_1, %c0_2] : memref<16x16xf32, #tpu.memory_space<vmem>>, vector<16x16xf32>
    %c0_3 = arith.constant 0 : index
    %c0_4 = arith.constant 0 : index
    %2 = vector.load %arg3[%c0_3, %c0_4] : memref<16x128xf32, #tpu.memory_space<vmem>>, vector<16x128xf32>
    %c0_5 = arith.constant 0 : index
    %c0_6 = arith.constant 0 : index
    %3 = vector.load %arg4[%c0_5, %c0_6] : memref<16x128xf32, #tpu.memory_space<vmem>>, vector<16x128xf32>
    %c0_7 = arith.constant 0 : index
    %c0_8 = arith.constant 0 : index
    %4 = vector.load %arg5[%c0_7, %c0_8] : memref<256x768xbf16, #tpu.memory_space<vmem>>, vector<256x768xbf16>
    %cst = arith.constant dense<0.000000e+00> : vector<16x768xf32>
    %5 = tpu.matmul %0, %4, %cst {dimension_numbers = #tpu.dot_dimension_numbers<[1], [0], [0], [1], [0, 0, 1, 1], [], []>} : vector<16x256xbf16>, vector<256x768xbf16>, vector<16x768xf32> -> vector<16x768xf32>
    %6 = vector.extract_strided_slice %5 {offsets = [0, 512], sizes = [16, 256], strides = [1, 1]} : vector<16x768xf32> to vector<16x256xf32>
    %7 = arith.truncf %6 : vector<16x256xf32> to vector<16x256xbf16>
    %8 = vector.extract_strided_slice %5 {offsets = [0, 0], sizes = [16, 128], strides = [1, 1]} : vector<16x768xf32> to vector<16x128xf32>
    %9 = vector.extract_strided_slice %5 {offsets = [0, 256], sizes = [16, 128], strides = [1, 1]} : vector<16x768xf32> to vector<16x128xf32>
    %10 = arith.mulf %8, %2 : vector<16x128xf32>
    %c64_i32 = arith.constant 64 : i32
    %11 = tpu.dynamic_rotate %8 by %c64_i32 dim 1 : vector<16x128xf32>, i32 -> vector<16x128xf32>
    %12 = arith.mulf %11, %3 : vector<16x128xf32>
    %13 = arith.addf %10, %12 : vector<16x128xf32>
    %14 = arith.mulf %9, %2 : vector<16x128xf32>
    %c64_i32_9 = arith.constant 64 : i32
    %15 = tpu.dynamic_rotate %9 by %c64_i32_9 dim 1 : vector<16x128xf32>, i32 -> vector<16x128xf32>
    %16 = arith.mulf %15, %3 : vector<16x128xf32>
    %17 = arith.addf %14, %16 : vector<16x128xf32>
    %18 = arith.truncf %13 : vector<16x128xf32> to vector<16x128xbf16>
    %19 = arith.truncf %17 : vector<16x128xf32> to vector<16x128xbf16>
    %cst_10 = arith.constant dense<0.000000e+00> : vector<16x16xf32>
    %20 = tpu.matmul %18, %19, %cst_10 {dimension_numbers = #tpu.dot_dimension_numbers<[1], [1], [0], [0], [0, 0, 1, 0], [], []>} : vector<16x128xbf16>, vector<16x128xbf16>, vector<16x16xf32> -> vector<16x16xf32>
    %cst_11 = arith.constant 0.0883883461 : f32
    %21 = vector.broadcast %cst_11 : f32 to vector<16x16xf32>
    %22 = arith.mulf %20, %21 : vector<16x16xf32>
    %23 = arith.addf %22, %1 : vector<16x16xf32>
    %cst_12 = arith.constant -3.40282347E+38 : f32
    %24 = vector.broadcast %cst_12 : f32 to vector<16x16xf32>
    %25 = arith.maximumf %23, %24 : vector<16x16xf32>
    %cst_13 = arith.constant dense<0xFF800000> : vector<16xf32>
    %26 = vector.multi_reduction <maximumf>, %25, %cst_13 [1] : vector<16x16xf32> to vector<16xf32>
    %27 = vector.shape_cast %26 : vector<16xf32> to vector<16x1xf32>
    %28 = vector.broadcast %27 : vector<16x1xf32> to vector<16x16xf32>
    %29 = arith.subf %25, %28 : vector<16x16xf32>
    %30 = math.exp %29 : vector<16x16xf32>
    %cst_14 = arith.constant dense<0.000000e+00> : vector<16xf32>
    %31 = vector.multi_reduction <add>, %30, %cst_14 [1] : vector<16x16xf32> to vector<16xf32>
    %32 = vector.shape_cast %31 : vector<16xf32> to vector<16x1xf32>
    %33 = tpu.reciprocal %32 : vector<16x1xf32> -> vector<16x1xf32>
    %34 = vector.broadcast %33 : vector<16x1xf32> to vector<16x16xf32>
    %35 = arith.mulf %30, %34 : vector<16x16xf32>
    %36 = arith.truncf %35 : vector<16x16xf32> to vector<16x16xbf16>
    %37 = vector.extract_strided_slice %7 {offsets = [0, 0], sizes = [16, 128], strides = [1, 1]} : vector<16x256xbf16> to vector<16x128xbf16>
    %cst_15 = arith.constant dense<0.000000e+00> : vector<16x128xf32>
    %38 = tpu.matmul %36, %37, %cst_15 {dimension_numbers = #tpu.dot_dimension_numbers<[1], [0], [0], [1], [0, 0, 1, 1], [], []>} : vector<16x16xbf16>, vector<16x128xbf16>, vector<16x128xf32> -> vector<16x128xf32>
    %39 = arith.truncf %38 : vector<16x128xf32> to vector<16x128xbf16>
    %40 = vector.extract_strided_slice %5 {offsets = [0, 128], sizes = [16, 128], strides = [1, 1]} : vector<16x768xf32> to vector<16x128xf32>
    %41 = vector.extract_strided_slice %5 {offsets = [0, 384], sizes = [16, 128], strides = [1, 1]} : vector<16x768xf32> to vector<16x128xf32>
    %42 = arith.mulf %40, %2 : vector<16x128xf32>
    %c64_i32_16 = arith.constant 64 : i32
    %43 = tpu.dynamic_rotate %40 by %c64_i32_16 dim 1 : vector<16x128xf32>, i32 -> vector<16x128xf32>
    %44 = arith.mulf %43, %3 : vector<16x128xf32>
    %45 = arith.addf %42, %44 : vector<16x128xf32>
    %46 = arith.mulf %41, %2 : vector<16x128xf32>
    %c64_i32_17 = arith.constant 64 : i32
    %47 = tpu.dynamic_rotate %41 by %c64_i32_17 dim 1 : vector<16x128xf32>, i32 -> vector<16x128xf32>
    %48 = arith.mulf %47, %3 : vector<16x128xf32>
    %49 = arith.addf %46, %48 : vector<16x128xf32>
    %50 = arith.truncf %45 : vector<16x128xf32> to vector<16x128xbf16>
    %51 = arith.truncf %49 : vector<16x128xf32> to vector<16x128xbf16>
    %cst_18 = arith.constant dense<0.000000e+00> : vector<16x16xf32>
    %52 = tpu.matmul %50, %51, %cst_18 {dimension_numbers = #tpu.dot_dimension_numbers<[1], [1], [0], [0], [0, 0, 1, 0], [], []>} : vector<16x128xbf16>, vector<16x128xbf16>, vector<16x16xf32> -> vector<16x16xf32>
    %cst_19 = arith.constant 0.0883883461 : f32
    %53 = vector.broadcast %cst_19 : f32 to vector<16x16xf32>
    %54 = arith.mulf %52, %53 : vector<16x16xf32>
    %55 = arith.addf %54, %1 : vector<16x16xf32>
    %cst_20 = arith.constant -3.40282347E+38 : f32
    %56 = vector.broadcast %cst_20 : f32 to vector<16x16xf32>
    %57 = arith.maximumf %55, %56 : vector<16x16xf32>
    %cst_21 = arith.constant dense<0xFF800000> : vector<16xf32>
    %58 = vector.multi_reduction <maximumf>, %57, %cst_21 [1] : vector<16x16xf32> to vector<16xf32>
    %59 = vector.shape_cast %58 : vector<16xf32> to vector<16x1xf32>
    %60 = vector.broadcast %59 : vector<16x1xf32> to vector<16x16xf32>
    %61 = arith.subf %57, %60 : vector<16x16xf32>
    %62 = math.exp %61 : vector<16x16xf32>
    %cst_22 = arith.constant dense<0.000000e+00> : vector<16xf32>
    %63 = vector.multi_reduction <add>, %62, %cst_22 [1] : vector<16x16xf32> to vector<16xf32>
    %64 = vector.shape_cast %63 : vector<16xf32> to vector<16x1xf32>
    %65 = tpu.reciprocal %64 : vector<16x1xf32> -> vector<16x1xf32>
    %66 = vector.broadcast %65 : vector<16x1xf32> to vector<16x16xf32>
    %67 = arith.mulf %62, %66 : vector<16x16xf32>
    %68 = arith.truncf %67 : vector<16x16xf32> to vector<16x16xbf16>
    %69 = vector.extract_strided_slice %7 {offsets = [0, 128], sizes = [16, 128], strides = [1, 1]} : vector<16x256xbf16> to vector<16x128xbf16>
    %cst_23 = arith.constant dense<0.000000e+00> : vector<16x128xf32>
    %70 = tpu.matmul %68, %69, %cst_23 {dimension_numbers = #tpu.dot_dimension_numbers<[1], [0], [0], [1], [0, 0, 1, 1], [], []>} : vector<16x16xbf16>, vector<16x128xbf16>, vector<16x128xf32> -> vector<16x128xf32>
    %71 = arith.truncf %70 : vector<16x128xf32> to vector<16x128xbf16>
    %72 = tpu.concatenate %39, %71 in 1 : vector<16x128xbf16>, vector<16x128xbf16> -> vector<16x256xbf16>
    %c0_24 = arith.constant 0 : index
    %c0_25 = arith.constant 0 : index
    %73 = vector.load %arg6[%c0_24, %c0_25] : memref<256x256xbf16, #tpu.memory_space<vmem>>, vector<256x256xbf16>
    %cst_26 = arith.constant dense<0.000000e+00> : vector<16x256xf32>
    %74 = tpu.matmul %72, %73, %cst_26 {dimension_numbers = #tpu.dot_dimension_numbers<[1], [0], [0], [1], [0, 0, 1, 1], [], []>} : vector<16x256xbf16>, vector<256x256xbf16>, vector<16x256xf32> -> vector<16x256xf32>
    %c0_27 = arith.constant 0 : index
    %c0_28 = arith.constant 0 : index
    %75 = vector.load %arg7[%c0_27, %c0_28] : memref<16x256xf32, #tpu.memory_space<vmem>>, vector<16x256xf32>
    tpu.vector_store %arg7[%c0_27, %c0_28], %74 {strides = array<i32>} : memref<16x256xf32, #tpu.memory_space<vmem>>, vector<16x256xf32>,
    return
  }
  func.func @transform_0(%arg0: i32) -> (i32, i32) {
    %c0_i32 = arith.constant 0 : i32
    %c0_i32_0 = arith.constant 0 : i32
    %c0_i32_1 = arith.constant 0 : i32
    return %c0_i32, %c0_i32_0 : i32, i32
  }
  func.func @transform_1(%arg0: i32) -> (i32, i32) {
    %c0_i32 = arith.constant 0 : i32
    %c0_i32_0 = arith.constant 0 : i32
    %c0_i32_1 = arith.constant 0 : i32
    return %c0_i32, %c0_i32_0 : i32, i32
  }
  func.func @transform_2(%arg0: i32) -> (i32, i32) {
    %c0_i32 = arith.constant 0 : i32
    %c0_i32_0 = arith.constant 0 : i32
    %c0_i32_1 = arith.constant 0 : i32
    return %c0_i32, %c0_i32_0 : i32, i32
  }
  func.func @transform_3(%arg0: i32) -> (i32, i32) {
    %c0_i32 = arith.constant 0 : i32
    %c0_i32_0 = arith.constant 0 : i32
    %c0_i32_1 = arith.constant 0 : i32
    return %c0_i32, %c0_i32_0 : i32, i32
  }
  func.func @transform_4(%arg0: i32) -> (i32, i32) {
    %c0_i32 = arith.constant 0 : i32
    %c0_i32_0 = arith.constant 0 : i32
    %c0_i32_1 = arith.constant 0 : i32
    return %c0_i32, %c0_i32_0 : i32, i32
  }
  func.func @transform_5(%arg0: i32) -> (i32, i32) {
    %c0_i32 = arith.constant 0 : i32
    %c0_i32_0 = arith.constant 0 : i32
    %c0_i32_1 = arith.constant 0 : i32
    return %c0_i32, %c0_i32_0 : i32, i32
  }
  func.func @transform_6(%arg0: i32) -> (i32, i32) {
    %c0_i32 = arith.constant 0 : i32
    %c0_i32_0 = arith.constant 0 : i32
    %c0_i32_1 = arith.constant 0 : i32
    return %c0_i32, %c0_i32_0 : i32, i32
  }
}

</mosaic_0001>

<llo_original>
// kernel: tpu_custom_call.1
$region0: #{tpu_custom_call.1}
  #allocation0 [shape = 'u32[]', space=smem, size = 0x4, offset = 0x4, fixed_abs, tag = 'smem constant byte address 0x4 - core index']
  #allocation1 [shape = 'u32[72,128]{1,0:T(1,128)}', space=vmem, size = 0x9000, scoped, tag = 'internal scratch']
  %s0 = inlined_call_operand.hbm [shape: bf16[16,256], index: 0, kind: input, shape index: {}]
  %s1 = inlined_call_operand.hbm [shape: f32[16,16], index: 1, kind: input, shape index: {}]
  %s2 = inlined_call_operand.hbm [shape: f32[16,128], index: 2, kind: input, shape index: {}]
  %s3 = inlined_call_operand.hbm [shape: f32[16,128], index: 3, kind: input, shape index: {}]
  %s4 = inlined_call_operand.hbm [shape: bf16[256,768], index: 4, kind: input, shape index: {}]
  %s5 = inlined_call_operand.hbm [shape: bf16[256,256], index: 5, kind: input, shape index: {}]
  %s6 = inlined_call_operand.hbm [shape: f32[16,256], index: 6, kind: output, shape index: {}]
  %s7 = sld [smem:[#allocation0]]
  $region58: #{tpu_custom_call.1} parent=0
    _
  %s9 = ssub.s32 1, %s7
  %s10 = scalar_select 0, %s9, %s7
  $region1: #{tpu_custom_call.1} parent=0
    #allocation2 [shape = 'u8[8192]{0}', space=vmem, size = 0x2000, scoped, tag = 'input window, operand 0, single buffered']
    #allocation3 [shape = 's32[1]{0}', space=sflag, size = 0x4, scoped, tag = 'scoped memory for tpu_custom_call.1']
    #allocation4 [shape = 's32[1]{0}', space=sflag, size = 0x4, scoped, tag = 'scoped memory for tpu_custom_call.1']
    #allocation5 [shape = 'u8[8192]{0}', space=vmem, size = 0x2000, scoped, tag = 'input window, operand 1, single buffered']
    #allocation6 [shape = 's32[1]{0}', space=sflag, size = 0x4, scoped, tag = 'scoped memory for tpu_custom_call.1']
    #allocation7 [shape = 'u8[8192]{0}', space=vmem, size = 0x2000, scoped, tag = 'input window, operand 2, single buffered']
    #allocation8 [shape = 'u8[8192]{0}', space=vmem, size = 0x2000, scoped, tag = 'input window, operand 3, single buffered']
    #allocation9 [shape = 's32[1]{0}', space=sflag, size = 0x4, scoped, tag = 'scoped memory for tpu_custom_call.1']
    #allocation10 [shape = 'u8[393216]{0}', space=vmem, size = 0x60000, scoped, tag = 'input window, operand 4, single buffered']
    #allocation11 [shape = 'u8[131072]{0}', space=vmem, size = 0x20000, scoped, tag = 'input window, operand 5, single buffered']
    #allocation12 [shape = 's32[1]{0}', space=sflag, size = 0x4, scoped, tag = 'scoped memory for tpu_custom_call.1']
    #allocation13 [shape = 'u8[16384]{0}', space=vmem, size = 0x4000, scoped, tag = 'output window, operand 0, single buffered']
    %11 = vsyncpa [#allocation3], 0
    %12 = vsyncpa [#allocation6], 0
    %13 = vsyncpa [#allocation9], 0
    %14 = vsyncpa [#allocation12], 0
    %15 = vsyncpa [#allocation4], 0
    // Predicated region
    $region2: #{tpu_custom_call.1} parent=1 // pred_check
      _
    $region3: #{tpu_custom_call.1} parent=1 // pred_check_branch
      %17 = sbr.rel (0) target = $region5
    $region4: #{tpu_custom_call.1} parent=1 // pred_region
      %19 = vsyncadd [#allocation3], 0
      %s20 = sshll.u32 %s0, 4
      %s21 = int_to_ptr.hbm [resolvable:$true] %s20
      %s22 = sshll.u32 [#allocation2], 4
      %s23 = int_to_ptr.vmem [resolvable:$true] %s22
      %28 = dma.hbm_to_vmem [thread:$0]  %s21, 256, %s23, [#allocation3], 128, 128, 8
    $region5: #{tpu_custom_call.1} parent=1 // pred_fallthru
      _
    // Predicated region
    $region6: #{tpu_custom_call.1} parent=1 // pred_check
      _
    $region7: #{tpu_custom_call.1} parent=1 // pred_check_branch
      %30 = sbr.rel (0) target = $region9
    $region8: #{tpu_custom_call.1} parent=1 // pred_region
      %32 = vsyncadd [#allocation6], 0
      %s33 = sshll.u32 %s1, 4
      %s34 = int_to_ptr.hbm [resolvable:$true] %s33
      %s35 = sshll.u32 [#allocation5], 4
      %s36 = int_to_ptr.vmem [resolvable:$true] %s35
      %41 = dma.hbm_to_vmem [thread:$0]  %s34, 256, %s36, [#allocation6], 128, 128, 8
    $region9: #{tpu_custom_call.1} parent=1 // pred_fallthru
      _
    // Predicated region
    $region10: #{tpu_custom_call.1} parent=1 // pred_check
      _
    $region11: #{tpu_custom_call.1} parent=1 // pred_check_branch
      %43 = sbr.rel (0) target = $region13
    $region12: #{tpu_custom_call.1} parent=1 // pred_region
      %45 = vsyncadd [#allocation6], 0
      %s46 = sshll.u32 %s2, 4
      %s47 = int_to_ptr.hbm [resolvable:$true] %s46
      %s48 = sshll.u32 [#allocation7], 4
      %s49 = int_to_ptr.vmem [resolvable:$true] %s48
      %54 = dma.hbm_to_vmem [thread:$0]  %s47, 256, %s49, [#allocation6], 128, 128, 8
    $region13: #{tpu_custom_call.1} parent=1 // pred_fallthru
      _
    // Predicated region
    $region14: #{tpu_custom_call.1} parent=1 // pred_check
      _
    $region15: #{tpu_custom_call.1} parent=1 // pred_check_branch
      %56 = sbr.rel (0) target = $region17
    $region16: #{tpu_custom_call.1} parent=1 // pred_region
      %58 = vsyncadd [#allocation9], 0
      %s59 = sshll.u32 %s3, 4
      %s60 = int_to_ptr.hbm [resolvable:$true] %s59
      %s61 = sshll.u32 [#allocation8], 4
      %s62 = int_to_ptr.vmem [resolvable:$true] %s61
      %67 = dma.hbm_to_vmem [thread:$0]  %s60, 256, %s62, [#allocation9], 128, 128, 8
    $region17: #{tpu_custom_call.1} parent=1 // pred_fallthru
      _
    // Predicated region
    $region18: #{tpu_custom_call.1} parent=1 // pred_check
      _
    $region19: #{tpu_custom_call.1} parent=1 // pred_check_branch
      %69 = sbr.rel (0) target = $region21
    $region20: #{tpu_custom_call.1} parent=1 // pred_region
      %71 = vsyncadd [#allocation9], 0
      %s72 = sshll.u32 %s4, 4
      %s73 = int_to_ptr.hbm [resolvable:$true] %s72
      %s74 = sshll.u32 [#allocation10], 4
      %s75 = int_to_ptr.vmem [resolvable:$true] %s74
      %80 = dma.hbm_to_vmem [thread:$0]  %s73, 12288, %s75, [#allocation9], 384, 384, 24
    $region21: #{tpu_custom_call.1} parent=1 // pred_fallthru
      _
    // Predicated region
    $region22: #{tpu_custom_call.1} parent=1 // pred_check
      _
    $region23: #{tpu_custom_call.1} parent=1 // pred_check_branch
      %82 = sbr.rel (0) target = $region25
    $region24: #{tpu_custom_call.1} parent=1 // pred_region
      %84 = vsyncadd [#allocation12], 0
      %s85 = sshll.u32 %s5, 4
      %s86 = int_to_ptr.hbm [resolvable:$true] %s85
      %s87 = sshll.u32 [#allocation11], 4
      %s88 = int_to_ptr.vmem [resolvable:$true] %s87
      %93 = dma.hbm_to_vmem [thread:$0]  %s86, 4096, %s88, [#allocation12], 128, 128, 8
    $region25: #{tpu_custom_call.1} parent=1 // pred_fallthru
      _
    // Predicated region
    $region26: #{tpu_custom_call.1} parent=1 // pred_check
      _
    $region27: #{tpu_custom_call.1} parent=1 // pred_check_branch
      %95 = sbr.rel (0) target = $region29
    $region28: #{tpu_custom_call.1} parent=1 // pred_region
      %97 = dma.done [#allocation3], 256
    $region29: #{tpu_custom_call.1} parent=1 // pred_fallthru
      _
    // Predicated region
    $region30: #{tpu_custom_call.1} parent=1 // pred_check
      _
    $region31: #{tpu_custom_call.1} parent=1 // pred_check_branch
      %99 = sbr.rel (0) target = $region33
    $region32: #{tpu_custom_call.1} parent=1 // pred_region
      %101 = dma.done [#allocation6], 256
    $region33: #{tpu_custom_call.1} parent=1 // pred_fallthru
      _
    // Predicated region
    $region34: #{tpu_custom_call.1} parent=1 // pred_check
      _
    $region35: #{tpu_custom_call.1} parent=1 // pred_check_branch
      %103 = sbr.rel (0) target = $region37
    $region36: #{tpu_custom_call.1} parent=1 // pred_region
      %105 = dma.done [#allocation6], 256
    $region37: #{tpu_custom_call.1} parent=1 // pred_fallthru
      _
    // Predicated region
    $region38: #{tpu_custom_call.1} parent=1 // pred_check
      _
    $region39: #{tpu_custom_call.1} parent=1 // pred_check_branch
      %107 = sbr.rel (0) target = $region41
    $region40: #{tpu_custom_call.1} parent=1 // pred_region
      %109 = dma.done [#allocation9], 256
    $region41: #{tpu_custom_call.1} parent=1 // pred_fallthru
      _
    // Predicated region
    $region42: #{tpu_custom_call.1} parent=1 // pred_check
      _
    $region43: #{tpu_custom_call.1} parent=1 // pred_check_branch
      %111 = sbr.rel (0) target = $region45
    $region44: #{tpu_custom_call.1} parent=1 // pred_region
      %113 = dma.done [#allocation9], 12288
    $region45: #{tpu_custom_call.1} parent=1 // pred_fallthru
      _
    // Predicated region
    $region46: #{tpu_custom_call.1} parent=1 // pred_check
      _
    $region47: #{tpu_custom_call.1} parent=1 // pred_check_branch
      %115 = sbr.rel (0) target = $region49
    $region48: #{tpu_custom_call.1} parent=1 // pred_region
      %117 = dma.done [#allocation12], 4096
    $region49: #{tpu_custom_call.1} parent=1 // pred_fallthru
      _
    %v119 = vld [vmem:[#allocation2] sm:$0xff]
    %v120 = vld [vmem:[#allocation2 + $0x8] sm:$0xff]
    %v121 = vld [vmem:[#allocation5] sm:$0xff]
    %v122 = vld [vmem:[#allocation5 + $0x8] sm:$0xff]
    %v123 = vld [vmem:[#allocation7] sm:$0xff]
    %v124 = vld [vmem:[#allocation7 + $0x8] sm:$0xff]
    %v125 = vld [vmem:[#allocation8] sm:$0xff]
    %v126 = vld [vmem:[#allocation8 + $0x8] sm:$0xff]
    %v127 = vld [vmem:[#allocation10] sm:$0xff]
    %v128 = vld [vmem:[#allocation10 + $0x8] sm:$0xff]
    %v129 = vld [vmem:[#allocation10 + $0x10] sm:$0xff]
    %v130 = vld [vmem:[#allocation10 + $0x18] sm:$0xff]
    %v131 = vld [vmem:[#allocation10 + $0x20] sm:$0xff]
    %v132 = vld [vmem:[#allocation10 + $0x28] sm:$0xff]
    %v133 = vld [vmem:[#allocation10 + $0x30] sm:$0xff]
    %v134 = vld [vmem:[#allocation10 + $0x38] sm:$0xff]
    %v135 = vld [vmem:[#allocation10 + $0x40] sm:$0xff]
    %v136 = vld [vmem:[#allocation10 + $0x48] sm:$0xff]
    %v137 = vld [vmem:[#allocation10 + $0x50] sm:$0xff]
    %v138 = vld [vmem:[#allocation10 + $0x58] sm:$0xff]
    %v139 = vld [vmem:[#allocation10 + $0x60] sm:$0xff]
    %v140 = vld [vmem:[#allocation10 + $0x68] sm:$0xff]
    %v141 = vld [vmem:[#allocation10 + $0x70] sm:$0xff]
    %v142 = vld [vmem:[#allocation10 + $0x78] sm:$0xff]
    %v143 = vld [vmem:[#allocation10 + $0x80] sm:$0xff]
    %v144 = vld [vmem:[#allocation10 + $0x88] sm:$0xff]
    %v145 = vld [vmem:[#allocation10 + $0x90] sm:$0xff]
    %v146 = vld [vmem:[#allocation10 + $0x98] sm:$0xff]
    %v147 = vld [vmem:[#allocation10 + $0xa0] sm:$0xff]
    %v148 = vld [vmem:[#allocation10 + $0xa8] sm:$0xff]
    %v149 = vld [vmem:[#allocation10 + $0xb0] sm:$0xff]
    %v150 = vld [vmem:[#allocation10 + $0xb8] sm:$0xff]
    %v151 = vld [vmem:[#allocation10 + $0xc0] sm:$0xff]
    %v152 = vld [vmem:[#allocation10 + $0xc8] sm:$0xff]
    %v153 = vld [vmem:[#allocation10 + $0xd0] sm:$0xff]
    %v154 = vld [vmem:[#allocation10 + $0xd8] sm:$0xff]
    %v155 = vld [vmem:[#allocation10 + $0xe0] sm:$0xff]
    %v156 = vld [vmem:[#allocation10 + $0xe8] sm:$0xff]
    %v157 = vld [vmem:[#allocation10 + $0xf0] sm:$0xff]
    %v158 = vld [vmem:[#allocation10 + $0xf8] sm:$0xff]
    %v159 = vld [vmem:[#allocation10 + $0x100] sm:$0xff]
    %v160 = vld [vmem:[#allocation10 + $0x108] sm:$0xff]
    %v161 = vld [vmem:[#allocation10 + $0x110] sm:$0xff]
    %v162 = vld [vmem:[#allocation10 + $0x118] sm:$0xff]
    %v163 = vld [vmem:[#allocation10 + $0x120] sm:$0xff]
    %v164 = vld [vmem:[#allocation10 + $0x128] sm:$0xff]
    %v165 = vld [vmem:[#allocation10 + $0x130] sm:$0xff]
    %v166 = vld [vmem:[#allocation10 + $0x138] sm:$0xff]
    %v167 = vld [vmem:[#allocation10 + $0x140] sm:$0xff]
    %v168 = vld [vmem:[#allocation10 + $0x148] sm:$0xff]
    %v169 = vld [vmem:[#allocation10 + $0x150] sm:$0xff]
    %v170 = vld [vmem:[#allocation10 + $0x158] sm:$0xff]
    %v171 = vld [vmem:[#allocation10 + $0x160] sm:$0xff]
    %v172 = vld [vmem:[#allocation10 + $0x168] sm:$0xff]
    %v173 = vld [vmem:[#allocation10 + $0x170] sm:$0xff]
    %v174 = vld [vmem:[#allocation10 + $0x178] sm:$0xff]
    %v175 = vld [vmem:[#allocation10 + $0x180] sm:$0xff]
    %v176 = vld [vmem:[#allocation10 + $0x188] sm:$0xff]
    %v177 = vld [vmem:[#allocation10 + $0x190] sm:$0xff]
    %v178 = vld [vmem:[#allocation10 + $0x198] sm:$0xff]
    %v179 = vld [vmem:[#allocation10 + $0x1a0] sm:$0xff]
    %v180 = vld [vmem:[#allocation10 + $0x1a8] sm:$0xff]
    %v181 = vld [vmem:[#allocation10 + $0x1b0] sm:$0xff]
    %v182 = vld [vmem:[#allocation10 + $0x1b8] sm:$0xff]
    %v183 = vld [vmem:[#allocation10 + $0x1c0] sm:$0xff]
    %v184 = vld [vmem:[#allocation10 + $0x1c8] sm:$0xff]
    %v185 = vld [vmem:[#allocation10 + $0x1d0] sm:$0xff]
    %v186 = vld [vmem:[#allocation10 + $0x1d8] sm:$0xff]
    %v187 = vld [vmem:[#allocation10 + $0x1e0] sm:$0xff]
    %v188 = vld [vmem:[#allocation10 + $0x1e8] sm:$0xff]
    %v189 = vld [vmem:[#allocation10 + $0x1f0] sm:$0xff]
    %v190 = vld [vmem:[#allocation10 + $0x1f8] sm:$0xff]
    %v191 = vld [vmem:[#allocation10 + $0x200] sm:$0xff]
    %v192 = vld [vmem:[#allocation10 + $0x208] sm:$0xff]
    %v193 = vld [vmem:[#allocation10 + $0x210] sm:$0xff]
    %v194 = vld [vmem:[#allocation10 + $0x218] sm:$0xff]
    %v195 = vld [vmem:[#allocation10 + $0x220] sm:$0xff]
    %v196 = vld [vmem:[#allocation10 + $0x228] sm:$0xff]
    %v197 = vld [vmem:[#allocation10 + $0x230] sm:$0xff]
    %v198 = vld [vmem:[#allocation10 + $0x238] sm:$0xff]
    %v199 = vld [vmem:[#allocation10 + $0x240] sm:$0xff]
    %v200 = vld [vmem:[#allocation10 + $0x248] sm:$0xff]
    %v201 = vld [vmem:[#allocation10 + $0x250] sm:$0xff]
    %v202 = vld [vmem:[#allocation10 + $0x258] sm:$0xff]
    %v203 = vld [vmem:[#allocation10 + $0x260] sm:$0xff]
    %v204 = vld [vmem:[#allocation10 + $0x268] sm:$0xff]
    %v205 = vld [vmem:[#allocation10 + $0x270] sm:$0xff]
    %v206 = vld [vmem:[#allocation10 + $0x278] sm:$0xff]
    %v207 = vld [vmem:[#allocation10 + $0x280] sm:$0xff]
    %v208 = vld [vmem:[#allocation10 + $0x288] sm:$0xff]
    %v209 = vld [vmem:[#allocation10 + $0x290] sm:$0xff]
    %v210 = vld [vmem:[#allocation10 + $0x298] sm:$0xff]
    %v211 = vld [vmem:[#allocation10 + $0x2a0] sm:$0xff]
    %v212 = vld [vmem:[#allocation10 + $0x2a8] sm:$0xff]
    %v213 = vld [vmem:[#allocation10 + $0x2b0] sm:$0xff]
    %v214 = vld [vmem:[#allocation10 + $0x2b8] sm:$0xff]
    %v215 = vld [vmem:[#allocation10 + $0x2c0] sm:$0xff]
    %v216 = vld [vmem:[#allocation10 + $0x2c8] sm:$0xff]
    %v217 = vld [vmem:[#allocation10 + $0x2d0] sm:$0xff]
    %v218 = vld [vmem:[#allocation10 + $0x2d8] sm:$0xff]
    %v219 = vld [vmem:[#allocation10 + $0x2e0] sm:$0xff]
    %v220 = vld [vmem:[#allocation10 + $0x2e8] sm:$0xff]
    %v221 = vld [vmem:[#allocation10 + $0x2f0] sm:$0xff]
    %v222 = vld [vmem:[#allocation10 + $0x2f8] sm:$0xff]
    %v225 = vunpack.c.l.b16 %v119
    %v226 = vunpack.c.h.b16 %v119
    %v227 = vunpack.c.l.b16 %v120
    %v228 = vunpack.c.h.b16 %v120
    %v229 = vpack.c.b16 %v227, %v225
    %v230 = vpack.c.b16 %v228, %v226
    %v329 = vunpack.c.l.b16 %v127
    %v330 = vunpack.c.h.b16 %v127
    %v331 = vunpack.c.l.b16 %v128
    %v332 = vunpack.c.h.b16 %v128
    %v333 = vunpack.c.l.b16 %v129
    %v334 = vunpack.c.h.b16 %v129
    %v335 = vunpack.c.l.b16 %v130
    %v336 = vunpack.c.h.b16 %v130
    %v337 = vunpack.c.l.b16 %v131
    %v338 = vunpack.c.h.b16 %v131
    %v339 = vunpack.c.l.b16 %v132
    %v340 = vunpack.c.h.b16 %v132
    %v341 = vunpack.c.l.b16 %v133
    %v342 = vunpack.c.h.b16 %v133
    %v343 = vunpack.c.l.b16 %v134
    %v344 = vunpack.c.h.b16 %v134
    %v345 = vunpack.c.l.b16 %v135
    %v346 = vunpack.c.h.b16 %v135
    %v347 = vunpack.c.l.b16 %v136
    %v348 = vunpack.c.h.b16 %v136
    %v349 = vunpack.c.l.b16 %v137
    %v350 = vunpack.c.h.b16 %v137
    %v351 = vunpack.c.l.b16 %v138
    %v352 = vunpack.c.h.b16 %v138
    %v353 = vunpack.c.l.b16 %v139
    %v354 = vunpack.c.h.b16 %v139
    %v355 = vunpack.c.l.b16 %v140
    %v356 = vunpack.c.h.b16 %v140
    %v357 = vunpack.c.l.b16 %v141
    %v358 = vunpack.c.h.b16 %v141
    %v359 = vunpack.c.l.b16 %v142
    %v360 = vunpack.c.h.b16 %v142
    %v361 = vunpack.c.l.b16 %v143
    %v362 = vunpack.c.h.b16 %v143
    %v363 = vunpack.c.l.b16 %v144
    %v364 = vunpack.c.h.b16 %v144
    %v365 = vunpack.c.l.b16 %v145
    %v366 = vunpack.c.h.b16 %v145
    %v367 = vunpack.c.l.b16 %v146
    %v368 = vunpack.c.h.b16 %v146
    %v369 = vunpack.c.l.b16 %v147
    %v370 = vunpack.c.h.b16 %v147
    %v371 = vunpack.c.l.b16 %v148
    %v372 = vunpack.c.h.b16 %v148
    %v373 = vunpack.c.l.b16 %v149
    %v374 = vunpack.c.h.b16 %v149
    %v375 = vunpack.c.l.b16 %v150
    %v376 = vunpack.c.h.b16 %v150
    %v377 = vunpack.c.l.b16 %v151
    %v378 = vunpack.c.h.b16 %v151
    %v379 = vunpack.c.l.b16 %v152
    %v380 = vunpack.c.h.b16 %v152
    %v381 = vunpack.c.l.b16 %v153
    %v382 = vunpack.c.h.b16 %v153
    %v383 = vunpack.c.l.b16 %v154
    %v384 = vunpack.c.h.b16 %v154
    %v385 = vunpack.c.l.b16 %v155
    %v386 = vunpack.c.h.b16 %v155
    %v387 = vunpack.c.l.b16 %v156
    %v388 = vunpack.c.h.b16 %v156
    %v389 = vunpack.c.l.b16 %v157
    %v390 = vunpack.c.h.b16 %v157
    %v391 = vunpack.c.l.b16 %v158
    %v392 = vunpack.c.h.b16 %v158
    %v393 = vunpack.c.l.b16 %v159
    %v394 = vunpack.c.h.b16 %v159
    %v395 = vunpack.c.l.b16 %v160
    %v396 = vunpack.c.h.b16 %v160
    %v397 = vunpack.c.l.b16 %v161
    %v398 = vunpack.c.h.b16 %v161
    %v399 = vunpack.c.l.b16 %v162
    %v400 = vunpack.c.h.b16 %v162
    %v401 = vunpack.c.l.b16 %v163
    %v402 = vunpack.c.h.b16 %v163
    %v403 = vunpack.c.l.b16 %v164
    %v404 = vunpack.c.h.b16 %v164
    %v405 = vunpack.c.l.b16 %v165
    %v406 = vunpack.c.h.b16 %v165
    %v407 = vunpack.c.l.b16 %v166
    %v408 = vunpack.c.h.b16 %v166
    %v409 = vunpack.c.l.b16 %v167
    %v410 = vunpack.c.h.b16 %v167
    %v411 = vunpack.c.l.b16 %v168
    %v412 = vunpack.c.h.b16 %v168
    %v413 = vunpack.c.l.b16 %v169
    %v414 = vunpack.c.h.b16 %v169
    %v415 = vunpack.c.l.b16 %v170
    %v416 = vunpack.c.h.b16 %v170
    %v417 = vunpack.c.l.b16 %v171
    %v418 = vunpack.c.h.b16 %v171
    %v419 = vunpack.c.l.b16 %v172
    %v420 = vunpack.c.h.b16 %v172
    %v421 = vunpack.c.l.b16 %v173
    %v422 = vunpack.c.h.b16 %v173
    %v423 = vunpack.c.l.b16 %v174
    %v424 = vunpack.c.h.b16 %v174
    %v425 = vunpack.c.l.b16 %v175
    %v426 = vunpack.c.h.b16 %v175
    %v427 = vunpack.c.l.b16 %v176
    %v428 = vunpack.c.h.b16 %v176
    %v429 = vunpack.c.l.b16 %v177
    %v430 = vunpack.c.h.b16 %v177
    %v431 = vunpack.c.l.b16 %v178
    %v432 = vunpack.c.h.b16 %v178
    %v433 = vunpack.c.l.b16 %v179
    %v434 = vunpack.c.h.b16 %v179
    %v435 = vunpack.c.l.b16 %v180
    %v436 = vunpack.c.h.b16 %v180
    %v437 = vunpack.c.l.b16 %v181
    %v438 = vunpack.c.h.b16 %v181
    %v439 = vunpack.c.l.b16 %v182
    %v440 = vunpack.c.h.b16 %v182
    %v441 = vunpack.c.l.b16 %v183
    %v442 = vunpack.c.h.b16 %v183
    %v443 = vunpack.c.l.b16 %v184
    %v444 = vunpack.c.h.b16 %v184
    %v445 = vunpack.c.l.b16 %v185
    %v446 = vunpack.c.h.b16 %v185
    %v447 = vunpack.c.l.b16 %v186
    %v448 = vunpack.c.h.b16 %v186
    %v449 = vunpack.c.l.b16 %v187
    %v450 = vunpack.c.h.b16 %v187
    %v451 = vunpack.c.l.b16 %v188
    %v452 = vunpack.c.h.b16 %v188
    %v453 = vunpack.c.l.b16 %v189
    %v454 = vunpack.c.h.b16 %v189
    %v455 = vunpack.c.l.b16 %v190
    %v456 = vunpack.c.h.b16 %v190
    %v457 = vunpack.c.l.b16 %v191
    %v458 = vunpack.c.h.b16 %v191
    %v459 = vunpack.c.l.b16 %v192
    %v460 = vunpack.c.h.b16 %v192
    %v461 = vunpack.c.l.b16 %v193
    %v462 = vunpack.c.h.b16 %v193
    %v463 = vunpack.c.l.b16 %v194
    %v464 = vunpack.c.h.b16 %v194
    %v465 = vunpack.c.l.b16 %v195
    %v466 = vunpack.c.h.b16 %v195
    %v467 = vunpack.c.l.b16 %v196
    %v468 = vunpack.c.h.b16 %v196
    %v469 = vunpack.c.l.b16 %v197
    %v470 = vunpack.c.h.b16 %v197
    %v471 = vunpack.c.l.b16 %v198
    %v472 = vunpack.c.h.b16 %v198
    %v473 = vunpack.c.l.b16 %v199
    %v474 = vunpack.c.h.b16 %v199
    %v475 = vunpack.c.l.b16 %v200
    %v476 = vunpack.c.h.b16 %v200
    %v477 = vunpack.c.l.b16 %v201
    %v478 = vunpack.c.h.b16 %v201
    %v479 = vunpack.c.l.b16 %v202
    %v480 = vunpack.c.h.b16 %v202
    %v481 = vunpack.c.l.b16 %v203
    %v482 = vunpack.c.h.b16 %v203
    %v483 = vunpack.c.l.b16 %v204
    %v484 = vunpack.c.h.b16 %v204
    %v485 = vunpack.c.l.b16 %v205
    %v486 = vunpack.c.h.b16 %v205
    %v487 = vunpack.c.l.b16 %v206
    %v488 = vunpack.c.h.b16 %v206
    %v489 = vunpack.c.l.b16 %v207
    %v490 = vunpack.c.h.b16 %v207
    %v491 = vunpack.c.l.b16 %v208
    %v492 = vunpack.c.h.b16 %v208
    %v493 = vunpack.c.l.b16 %v209
    %v494 = vunpack.c.h.b16 %v209
    %v495 = vunpack.c.l.b16 %v210
    %v496 = vunpack.c.h.b16 %v210
    %v497 = vunpack.c.l.b16 %v211
    %v498 = vunpack.c.h.b16 %v211
    %v499 = vunpack.c.l.b16 %v212
    %v500 = vunpack.c.h.b16 %v212
    %v501 = vunpack.c.l.b16 %v213
    %v502 = vunpack.c.h.b16 %v213
    %v503 = vunpack.c.l.b16 %v214
    %v504 = vunpack.c.h.b16 %v214
    %v505 = vunpack.c.l.b16 %v215
    %v506 = vunpack.c.h.b16 %v215
    %v507 = vunpack.c.l.b16 %v216
    %v508 = vunpack.c.h.b16 %v216
    %v509 = vunpack.c.l.b16 %v217
    %v510 = vunpack.c.h.b16 %v217
    %v511 = vunpack.c.l.b16 %v218
    %v512 = vunpack.c.h.b16 %v218
    %v513 = vunpack.c.l.b16 %v219
    %v514 = vunpack.c.h.b16 %v219
    %v515 = vunpack.c.l.b16 %v220
    %v516 = vunpack.c.h.b16 %v220
    %v517 = vunpack.c.l.b16 %v221
    %v518 = vunpack.c.h.b16 %v221
    %v519 = vunpack.c.l.b16 %v222
    %v520 = vunpack.c.h.b16 %v222
    %v521 = vpack.c.b16 %v335, %v329
    %v522 = vpack.c.b16 %v336, %v330
    %v523 = vpack.c.b16 %v337, %v331
    %v524 = vpack.c.b16 %v338, %v332
    %v525 = vpack.c.b16 %v339, %v333
    %v526 = vpack.c.b16 %v340, %v334
    %v527 = vpack.c.b16 %v347, %v341
    %v528 = vpack.c.b16 %v348, %v342
    %v529 = vpack.c.b16 %v349, %v343
    %v530 = vpack.c.b16 %v350, %v344
    %v531 = vpack.c.b16 %v351, %v345
    %v532 = vpack.c.b16 %v352, %v346
    %v533 = vpack.c.b16 %v359, %v353
    %v534 = vpack.c.b16 %v360, %v354
    %v535 = vpack.c.b16 %v361, %v355
    %v536 = vpack.c.b16 %v362, %v356
    %v537 = vpack.c.b16 %v363, %v357
    %v538 = vpack.c.b16 %v364, %v358
    %v539 = vpack.c.b16 %v371, %v365
    %v540 = vpack.c.b16 %v372, %v366
    %v541 = vpack.c.b16 %v373, %v367
    %v542 = vpack.c.b16 %v374, %v368
    %v543 = vpack.c.b16 %v375, %v369
    %v544 = vpack.c.b16 %v376, %v370
    %v545 = vpack.c.b16 %v383, %v377
    %v546 = vpack.c.b16 %v384, %v378
    %v547 = vpack.c.b16 %v385, %v379
    %v548 = vpack.c.b16 %v386, %v380
    %v549 = vpack.c.b16 %v387, %v381
    %v550 = vpack.c.b16 %v388, %v382
    %v551 = vpack.c.b16 %v395, %v389
    %v552 = vpack.c.b16 %v396, %v390
    %v553 = vpack.c.b16 %v397, %v391
    %v554 = vpack.c.b16 %v398, %v392
    %v555 = vpack.c.b16 %v399, %v393
    %v556 = vpack.c.b16 %v400, %v394
    %v557 = vpack.c.b16 %v407, %v401
    %v558 = vpack.c.b16 %v408, %v402
    %v559 = vpack.c.b16 %v409, %v403
    %v560 = vpack.c.b16 %v410, %v404
    %v561 = vpack.c.b16 %v411, %v405
    %v562 = vpack.c.b16 %v412, %v406
    %v563 = vpack.c.b16 %v419, %v413
    %v564 = vpack.c.b16 %v420, %v414
    %v565 = vpack.c.b16 %v421, %v415
    %v566 = vpack.c.b16 %v422, %v416
    %v567 = vpack.c.b16 %v423, %v417
    %v568 = vpack.c.b16 %v424, %v418
    %v569 = vpack.c.b16 %v431, %v425
    %v570 = vpack.c.b16 %v432, %v426
    %v571 = vpack.c.b16 %v433, %v427
    %v572 = vpack.c.b16 %v434, %v428
    %v573 = vpack.c.b16 %v435, %v429
    %v574 = vpack.c.b16 %v436, %v430
    %v575 = vpack.c.b16 %v443, %v437
    %v576 = vpack.c.b16 %v444, %v438
    %v577 = vpack.c.b16 %v445, %v439
    %v578 = vpack.c.b16 %v446, %v440
    %v579 = vpack.c.b16 %v447, %v441
    %v580 = vpack.c.b16 %v448, %v442
    %v581 = vpack.c.b16 %v455, %v449
    %v582 = vpack.c.b16 %v456, %v450
    %v583 = vpack.c.b16 %v457, %v451
    %v584 = vpack.c.b16 %v458, %v452
    %v585 = vpack.c.b16 %v459, %v453
    %v586 = vpack.c.b16 %v460, %v454
    %v587 = vpack.c.b16 %v467, %v461
    %v588 = vpack.c.b16 %v468, %v462
    %v589 = vpack.c.b16 %v469, %v463
    %v590 = vpack.c.b16 %v470, %v464
    %v591 = vpack.c.b16 %v471, %v465
    %v592 = vpack.c.b16 %v472, %v466
    %v593 = vpack.c.b16 %v479, %v473
    %v594 = vpack.c.b16 %v480, %v474
    %v595 = vpack.c.b16 %v481, %v475
    %v596 = vpack.c.b16 %v482, %v476
    %v597 = vpack.c.b16 %v483, %v477
    %v598 = vpack.c.b16 %v484, %v478
    %v599 = vpack.c.b16 %v491, %v485
    %v600 = vpack.c.b16 %v492, %v486
    %v601 = vpack.c.b16 %v493, %v487
    %v602 = vpack.c.b16 %v494, %v488
    %v603 = vpack.c.b16 %v495, %v489
    %v604 = vpack.c.b16 %v496, %v490
    %v605 = vpack.c.b16 %v503, %v497
    %v606 = vpack.c.b16 %v504, %v498
    %v607 = vpack.c.b16 %v505, %v499
    %v608 = vpack.c.b16 %v506, %v500
    %v609 = vpack.c.b16 %v507, %v501
    %v610 = vpack.c.b16 %v508, %v502
    %v611 = vpack.c.b16 %v515, %v509
    %v612 = vpack.c.b16 %v516, %v510
    %v613 = vpack.c.b16 %v517, %v511
    %v614 = vpack.c.b16 %v518, %v512
    %v615 = vpack.c.b16 %v519, %v513
    %v616 = vpack.c.b16 %v520, %v514
    %713 = vmatpush.bf16.msra.mxu0 %v563
    %714 = vmatpush.bf16.msra.mxu0 %v557
    %715 = vmatpush.bf16.msra.mxu0 %v551
    %716 = vmatpush.bf16.msra.mxu0 %v545
    %717 = vmatpush.bf16.msra.mxu0 %v539
    %718 = vmatpush.bf16.msra.mxu0 %v533
    %719 = vmatpush.bf16.msra.mxu0 %v527
    %720 = vmatpush.bf16.msra.mxu0 %v521
    %721 = vmatmul.bf16.gmra.mxu0 %v229
    %v722 = vpop.f32.mrf.mxu0
    %v723 = vadd.f32 0.0, %v722
    %v724 = vpop.f32.mrf.mxu0
    %v725 = vadd.f32 0.0, %v724
    %726 = vdwg.mxu0
    %727 = vmatpush.bf16.msra.mxu0 %v611
    %728 = vmatpush.bf16.msra.mxu0 %v605
    %729 = vmatpush.bf16.msra.mxu0 %v599
    %730 = vmatpush.bf16.msra.mxu0 %v593
    %731 = vmatpush.bf16.msra.mxu0 %v587
    %732 = vmatpush.bf16.msra.mxu0 %v581
    %733 = vmatpush.bf16.msra.mxu0 %v575
    %734 = vmatpush.bf16.msra.mxu0 %v569
    %735 = vmatmul.bf16.gmra.mxu0 %v230
    %v736 = vpop.f32.mrf.mxu0
    %v737 = vadd.f32 %v723, %v736
    %v738 = vpop.f32.mrf.mxu0
    %v739 = vadd.f32 %v725, %v738
    %740 = vdwg.mxu0
    %741 = vmatpush.bf16.msra.mxu0 %v564
    %742 = vmatpush.bf16.msra.mxu0 %v558
    %743 = vmatpush.bf16.msra.mxu0 %v552
    %744 = vmatpush.bf16.msra.mxu0 %v546
    %745 = vmatpush.bf16.msra.mxu0 %v540
    %746 = vmatpush.bf16.msra.mxu0 %v534
    %747 = vmatpush.bf16.msra.mxu0 %v528
    %748 = vmatpush.bf16.msra.mxu0 %v522
    %749 = vmatmul.bf16.gmra.mxu0 %v229
    %v750 = vpop.f32.mrf.mxu0
    %v751 = vadd.f32 0.0, %v750
    %v752 = vpop.f32.mrf.mxu0
    %v753 = vadd.f32 0.0, %v752
    %754 = vdwg.mxu0
    %755 = vmatpush.bf16.msra.mxu0 %v612
    %756 = vmatpush.bf16.msra.mxu0 %v606
    %757 = vmatpush.bf16.msra.mxu0 %v600
    %758 = vmatpush.bf16.msra.mxu0 %v594
    %759 = vmatpush.bf16.msra.mxu0 %v588
    %760 = vmatpush.bf16.msra.mxu0 %v582
    %761 = vmatpush.bf16.msra.mxu0 %v576
    %762 = vmatpush.bf16.msra.mxu0 %v570
    %763 = vmatmul.bf16.gmra.mxu0 %v230
    %v764 = vpop.f32.mrf.mxu0
    %v765 = vadd.f32 %v751, %v764
    %v766 = vpop.f32.mrf.mxu0
    %v767 = vadd.f32 %v753, %v766
    %768 = vdwg.mxu0
    %769 = vmatpush.bf16.msra.mxu0 %v565
    %770 = vmatpush.bf16.msra.mxu0 %v559
    %771 = vmatpush.bf16.msra.mxu0 %v553
    %772 = vmatpush.bf16.msra.mxu0 %v547
    %773 = vmatpush.bf16.msra.mxu0 %v541
    %774 = vmatpush.bf16.msra.mxu0 %v535
    %775 = vmatpush.bf16.msra.mxu0 %v529
    %776 = vmatpush.bf16.msra.mxu0 %v523
    %777 = vmatmul.bf16.gmra.mxu0 %v229
    %v778 = vpop.f32.mrf.mxu0
    %v779 = vadd.f32 0.0, %v778
    %v780 = vpop.f32.mrf.mxu0
    %v781 = vadd.f32 0.0, %v780
    %782 = vdwg.mxu0
    %783 = vmatpush.bf16.msra.mxu0 %v613
    %784 = vmatpush.bf16.msra.mxu0 %v607
    %785 = vmatpush.bf16.msra.mxu0 %v601
    %786 = vmatpush.bf16.msra.mxu0 %v595
    %787 = vmatpush.bf16.msra.mxu0 %v589
    %788 = vmatpush.bf16.msra.mxu0 %v583
    %789 = vmatpush.bf16.msra.mxu0 %v577
    %790 = vmatpush.bf16.msra.mxu0 %v571
    %791 = vmatmul.bf16.gmra.mxu0 %v230
    %v792 = vpop.f32.mrf.mxu0
    %v793 = vadd.f32 %v779, %v792
    %v794 = vpop.f32.mrf.mxu0
    %v795 = vadd.f32 %v781, %v794
    %796 = vdwg.mxu0
    %797 = vmatpush.bf16.msra.mxu0 %v566
    %798 = vmatpush.bf16.msra.mxu0 %v560
    %799 = vmatpush.bf16.msra.mxu0 %v554
    %800 = vmatpush.bf16.msra.mxu0 %v548
    %801 = vmatpush.bf16.msra.mxu0 %v542
    %802 = vmatpush.bf16.msra.mxu0 %v536
    %803 = vmatpush.bf16.msra.mxu0 %v530
    %804 = vmatpush.bf16.msra.mxu0 %v524
    %805 = vmatmul.bf16.gmra.mxu0 %v229
    %v806 = vpop.f32.mrf.mxu0
    %v807 = vadd.f32 0.0, %v806
    %v808 = vpop.f32.mrf.mxu0
    %v809 = vadd.f32 0.0, %v808
    %810 = vdwg.mxu0
    %811 = vmatpush.bf16.msra.mxu0 %v614
    %812 = vmatpush.bf16.msra.mxu0 %v608
    %813 = vmatpush.bf16.msra.mxu0 %v602
    %814 = vmatpush.bf16.msra.mxu0 %v596
    %815 = vmatpush.bf16.msra.mxu0 %v590
    %816 = vmatpush.bf16.msra.mxu0 %v584
    %817 = vmatpush.bf16.msra.mxu0 %v578
    %818 = vmatpush.bf16.msra.mxu0 %v572
    %819 = vmatmul.bf16.gmra.mxu0 %v230
    %v820 = vpop.f32.mrf.mxu0
    %v821 = vadd.f32 %v807, %v820
    %v822 = vpop.f32.mrf.mxu0
    %v823 = vadd.f32 %v809, %v822
    %824 = vdwg.mxu0
    %825 = vmatpush.bf16.msra.mxu0 %v567
    %826 = vmatpush.bf16.msra.mxu0 %v561
    %827 = vmatpush.bf16.msra.mxu0 %v555
    %828 = vmatpush.bf16.msra.mxu0 %v549
    %829 = vmatpush.bf16.msra.mxu0 %v543
    %830 = vmatpush.bf16.msra.mxu0 %v537
    %831 = vmatpush.bf16.msra.mxu0 %v531
    %832 = vmatpush.bf16.msra.mxu0 %v525
    %833 = vmatmul.bf16.gmra.mxu0 %v229
    %v834 = vpop.f32.mrf.mxu0
    %v835 = vadd.f32 0.0, %v834
    %v836 = vpop.f32.mrf.mxu0
    %v837 = vadd.f32 0.0, %v836
    %838 = vdwg.mxu0
    %839 = vmatpush.bf16.msra.mxu0 %v615
    %840 = vmatpush.bf16.msra.mxu0 %v609
    %841 = vmatpush.bf16.msra.mxu0 %v603
    %842 = vmatpush.bf16.msra.mxu0 %v597
    %843 = vmatpush.bf16.msra.mxu0 %v591
    %844 = vmatpush.bf16.msra.mxu0 %v585
    %845 = vmatpush.bf16.msra.mxu0 %v579
    %846 = vmatpush.bf16.msra.mxu0 %v573
    %847 = vmatmul.bf16.gmra.mxu0 %v230
    %v848 = vpop.f32.mrf.mxu0
    %v849 = vadd.f32 %v835, %v848
    %v850 = vpop.f32.mrf.mxu0
    %v851 = vadd.f32 %v837, %v850
    %852 = vdwg.mxu0
    %853 = vmatpush.bf16.msra.mxu0 %v568
    %854 = vmatpush.bf16.msra.mxu0 %v562
    %855 = vmatpush.bf16.msra.mxu0 %v556
    %856 = vmatpush.bf16.msra.mxu0 %v550
    %857 = vmatpush.bf16.msra.mxu0 %v544
    %858 = vmatpush.bf16.msra.mxu0 %v538
    %859 = vmatpush.bf16.msra.mxu0 %v532
    %860 = vmatpush.bf16.msra.mxu0 %v526
    %861 = vmatmul.bf16.gmra.mxu0 %v229
    %v862 = vpop.f32.mrf.mxu0
    %v863 = vadd.f32 0.0, %v862
    %v864 = vpop.f32.mrf.mxu0
    %v865 = vadd.f32 0.0, %v864
    %866 = vdwg.mxu0
    %867 = vmatpush.bf16.msra.mxu0 %v616
    %868 = vmatpush.bf16.msra.mxu0 %v610
    %869 = vmatpush.bf16.msra.mxu0 %v604
    %870 = vmatpush.bf16.msra.mxu0 %v598
    %871 = vmatpush.bf16.msra.mxu0 %v592
    %872 = vmatpush.bf16.msra.mxu0 %v586
    %873 = vmatpush.bf16.msra.mxu0 %v580
    %874 = vmatpush.bf16.msra.mxu0 %v574
    %875 = vmatmul.bf16.gmra.mxu0 %v230
    %v876 = vpop.f32.mrf.mxu0
    %v877 = vadd.f32 %v863, %v876
    %v878 = vpop.f32.mrf.mxu0
    %v879 = vadd.f32 %v865, %v878
    %880 = vdwg.mxu0
    %v881 = vpack.c.bf16 %v877, %v849
    %v882 = vpack.c.bf16 %v879, %v851
    %v883 = vmul.f32 %v737, %v123
    %v884 = vmul.f32 %v739, %v124
    %885 = vrot.lane.b32.xlu0 %v737, 64
    %v886 = vpop.permute.xlu0 %885
    %887 = vrot.lane.b32.xlu0 %v739, 64
    %v888 = vpop.permute.xlu0 %887
    %v889 = vmul.f32 %v886, %v125
    %v890 = vmul.f32 %v888, %v126
    %v891 = vadd.f32 %v883, %v889
    %v892 = vadd.f32 %v884, %v890
    %v893 = vmul.f32 %v793, %v123
    %v894 = vmul.f32 %v795, %v124
    %895 = vrot.lane.b32.xlu0 %v793, 64
    %v896 = vpop.permute.xlu0 %895
    %897 = vrot.lane.b32.xlu0 %v795, 64
    %v898 = vpop.permute.xlu0 %897
    %v899 = vmul.f32 %v896, %v125
    %v900 = vmul.f32 %v898, %v126
    %v901 = vadd.f32 %v893, %v899
    %v902 = vadd.f32 %v894, %v900
    %v903 = vpack.c.bf16 %v892, %v891
    %v904 = vpack.c.bf16 %v902, %v901
    %905 = vmatpush.bf16.xpose.msra.mxu0 0
    %906 = vmatpush.bf16.xpose.msra.mxu0 0
    %907 = vmatpush.bf16.xpose.msra.mxu0 0
    %908 = vmatpush.bf16.xpose.msra.mxu0 0
    %909 = vmatpush.bf16.xpose.msra.mxu0 0
    %910 = vmatpush.bf16.xpose.msra.mxu0 0
    %911 = vmatpush.bf16.xpose.msra.mxu0 0
    %912 = vmatpush.bf16.xpose.msra.mxu0 %v904
    %913 = vmatmul.bf16.gmra.mxu0 %v903
    %v914 = vpop.f32.mrf.mxu0
    %v915 = vadd.f32 0.0, %v914
    %v916 = vpop.f32.mrf.mxu0
    %v917 = vadd.f32 0.0, %v916
    %918 = vdwg.mxu0
    %v919 = vmul.f32 %v915, 0.088388346
    %v920 = vmul.f32 %v917, 0.088388346
    %v921 = vadd.f32 %v919, %v121
    %v922 = vadd.f32 %v920, %v122
    %v923 = vmax.f32 %v921, -3.4028235e+38
    %v924 = vmax.f32 %v922, -3.4028235e+38
    %vm925 = vcmask 130048
    %v926 = vsel %vm925, %v923, -inf
    %927 = vmax.xlane.f32.xlu0 %v926
    %v928 = vpop.xlane.xlu0 %927
    %v929 = vsel %vm925, %v924, -inf
    %930 = vmax.xlane.f32.xlu0 %v929
    %v931 = vpop.xlane.xlu0 %930
    %v932 = vsub.f32 %v923, %v928
    %v933 = vsub.f32 %v924, %v931
    %v934 = vmul.f32 %v932, 1.442695
    %v935 = vpow.pop %v934
    %v936 = vmul.f32 %v933, 1.442695
    %v937 = vpow.pop %v936
    %v938 = vsel %vm925, %v935, 0.0
    %939 = vadd.xlane.f32.xlu0 %v938
    %v940 = vpop.xlane.xlu0 %939
    %v941 = vsel %vm925, %v937, 0.0
    %942 = vadd.xlane.f32.xlu0 %v941
    %v943 = vpop.xlane.xlu0 %942
    %v944 = vrcp.pop %v940
    %v945 = vmul.f32 %v940, %v944
    %v946 = vsub.f32 1.0, %v945
    %v947 = vmul.f32 %v944, %v946
    %v948 = vadd.f32 %v944, %v947
    %vm949 = vweird.f32 %v940
    %vm950 = vweird.f32 %v944
    %vm951 = vmor %vm949, %vm950
    %v952 = vsel %vm951, %v944, %v948
    %v953 = vand.u32 2147483647, %v940
    %vm954 = vcmp.eq.f32.partialorder %v953, 8.507059e+37
    %v955 = vand.u32 %v940, 2147483648
    %v956 = vor.u32 1.1754944e-38, %v955
    %v957 = vsel %vm954, %v956, %v952
    %v958 = vrcp.pop %v943
    %v959 = vmul.f32 %v943, %v958
    %v960 = vsub.f32 1.0, %v959
    %v961 = vmul.f32 %v958, %v960
    %v962 = vadd.f32 %v958, %v961
    %vm963 = vweird.f32 %v943
    %vm964 = vweird.f32 %v958
    %vm965 = vmor %vm963, %vm964
    %v966 = vsel %vm965, %v958, %v962
    %v967 = vand.u32 2147483647, %v943
    %vm968 = vcmp.eq.f32.partialorder %v967, 8.507059e+37
    %v969 = vand.u32 %v943, 2147483648
    %v970 = vor.u32 1.1754944e-38, %v969
    %v971 = vsel %vm968, %v970, %v966
    %v972 = vmul.f32 %v935, %v957
    %v973 = vmul.f32 %v937, %v971
    %v974 = vpack.c.bf16 %v973, %v972
    %v977 = vunpack.c.l.b16 %v881
    %v978 = vunpack.c.l.b16 %v882
    %v979 = vpack.c.b16 %v978, %v977
    %v982 = vsel %vm925, %v974, 0
    %984 = vmatpush.bf16.msra.mxu0 0
    %985 = vmatpush.bf16.msra.mxu0 0
    %986 = vmatpush.bf16.msra.mxu0 0
    %987 = vmatpush.bf16.msra.mxu0 0
    %988 = vmatpush.bf16.msra.mxu0 0
    %989 = vmatpush.bf16.msra.mxu0 0
    %990 = vmatpush.bf16.msra.mxu0 0
    %991 = vmatpush.bf16.msra.mxu0 %v979
    %992 = vmatmul.bf16.gmra.mxu0 %v982
    %v993 = vpop.f32.mrf.mxu0
    %v994 = vadd.f32 0.0, %v993
    %v995 = vpop.f32.mrf.mxu0
    %v996 = vadd.f32 0.0, %v995
    %997 = vdwg.mxu0
    %v998 = vpack.c.bf16 %v994, %v994
    %v999 = vpack.c.bf16 %v996, %v996
    %v1000 = vmul.f32 %v765, %v123
    %v1001 = vmul.f32 %v767, %v124
    %1002 = vrot.lane.b32.xlu0 %v765, 64
    %v1003 = vpop.permute.xlu0 %1002
    %1004 = vrot.lane.b32.xlu0 %v767, 64
    %v1005 = vpop.permute.xlu0 %1004
    %v1006 = vmul.f32 %v1003, %v125
    %v1007 = vmul.f32 %v1005, %v126
    %v1008 = vadd.f32 %v1000, %v1006
    %v1009 = vadd.f32 %v1001, %v1007
    %v1010 = vmul.f32 %v821, %v123
    %v1011 = vmul.f32 %v823, %v124
    %1012 = vrot.lane.b32.xlu0 %v821, 64
    %v1013 = vpop.permute.xlu0 %1012
    %1014 = vrot.lane.b32.xlu0 %v823, 64
    %v1015 = vpop.permute.xlu0 %1014
    %v1016 = vmul.f32 %v1013, %v125
    %v1017 = vmul.f32 %v1015, %v126
    %v1018 = vadd.f32 %v1010, %v1016
    %v1019 = vadd.f32 %v1011, %v1017
    %v1020 = vpack.c.bf16 %v1009, %v1008
    %v1021 = vpack.c.bf16 %v1019, %v1018
    %1022 = vmatpush.bf16.xpose.msra.mxu0 0
    %1023 = vmatpush.bf16.xpose.msra.mxu0 0
    %1024 = vmatpush.bf16.xpose.msra.mxu0 0
    %1025 = vmatpush.bf16.xpose.msra.mxu0 0
    %1026 = vmatpush.bf16.xpose.msra.mxu0 0
    %1027 = vmatpush.bf16.xpose.msra.mxu0 0
    %1028 = vmatpush.bf16.xpose.msra.mxu0 0
    %1029 = vmatpush.bf16.xpose.msra.mxu0 %v1021
    %1030 = vmatmul.bf16.gmra.mxu0 %v1020
    %v1031 = vpop.f32.mrf.mxu0
    %v1032 = vadd.f32 0.0, %v1031
    %v1033 = vpop.f32.mrf.mxu0
    %v1034 = vadd.f32 0.0, %v1033
    %1035 = vdwg.mxu0
    %v1036 = vmul.f32 %v1032, 0.088388346
    %v1037 = vmul.f32 %v1034, 0.088388346
    %v1038 = vadd.f32 %v1036, %v121
    %v1039 = vadd.f32 %v1037, %v122
    %v1040 = vmax.f32 %v1038, -3.4028235e+38
    %v1041 = vmax.f32 %v1039, -3.4028235e+38
    %v1042 = vsel %vm925, %v1040, -inf
    %1043 = vmax.xlane.f32.xlu0 %v1042
    %v1044 = vpop.xlane.xlu0 %1043
    %v1045 = vsel %vm925, %v1041, -inf
    %1046 = vmax.xlane.f32.xlu0 %v1045
    %v1047 = vpop.xlane.xlu0 %1046
    %v1048 = vsub.f32 %v1040, %v1044
    %v1049 = vsub.f32 %v1041, %v1047
    %v1050 = vmul.f32 %v1048, 1.442695
    %v1051 = vpow.pop %v1050
    %v1052 = vmul.f32 %v1049, 1.442695
    %v1053 = vpow.pop %v1052
    %v1054 = vsel %vm925, %v1051, 0.0
    %1055 = vadd.xlane.f32.xlu0 %v1054
    %v1056 = vpop.xlane.xlu0 %1055
    %v1057 = vsel %vm925, %v1053, 0.0
    %1058 = vadd.xlane.f32.xlu0 %v1057
    %v1059 = vpop.xlane.xlu0 %1058
    %v1060 = vrcp.pop %v1056
    %v1061 = vmul.f32 %v1056, %v1060
    %v1062 = vsub.f32 1.0, %v1061
    %v1063 = vmul.f32 %v1060, %v1062
    %v1064 = vadd.f32 %v1060, %v1063
    %vm1065 = vweird.f32 %v1056
    %vm1066 = vweird.f32 %v1060
    %vm1067 = vmor %vm1065, %vm1066
    %v1068 = vsel %vm1067, %v1060, %v1064
    %v1069 = vand.u32 2147483647, %v1056
    %vm1070 = vcmp.eq.f32.partialorder %v1069, 8.507059e+37
    %v1071 = vand.u32 %v1056, 2147483648
    %v1072 = vor.u32 1.1754944e-38, %v1071
    %v1073 = vsel %vm1070, %v1072, %v1068
    %v1074 = vrcp.pop %v1059
    %v1075 = vmul.f32 %v1059, %v1074
    %v1076 = vsub.f32 1.0, %v1075
    %v1077 = vmul.f32 %v1074, %v1076
    %v1078 = vadd.f32 %v1074, %v1077
    %vm1079 = vweird.f32 %v1059
    %vm1080 = vweird.f32 %v1074
    %vm1081 = vmor %vm1079, %vm1080
    %v1082 = vsel %vm1081, %v1074, %v1078
    %v1083 = vand.u32 2147483647, %v1059
    %vm1084 = vcmp.eq.f32.partialorder %v1083, 8.507059e+37
    %v1085 = vand.u32 %v1059, 2147483648
    %v1086 = vor.u32 1.1754944e-38, %v1085
    %v1087 = vsel %vm1084, %v1086, %v1082
    %v1088 = vmul.f32 %v1051, %v1073
    %v1089 = vmul.f32 %v1053, %v1087
    %v1090 = vpack.c.bf16 %v1089, %v1088
    %v1091 = vunpack.c.h.b16 %v881
    %v1092 = vunpack.c.h.b16 %v882
    %v1093 = vpack.c.b16 %v1092, %v1091
    %v1096 = vsel %vm925, %v1090, 0
    %1098 = vmatpush.bf16.msra.mxu0 0
    %1099 = vmatpush.bf16.msra.mxu0 0
    %1100 = vmatpush.bf16.msra.mxu0 0
    %1101 = vmatpush.bf16.msra.mxu0 0
    %1102 = vmatpush.bf16.msra.mxu0 0
    %1103 = vmatpush.bf16.msra.mxu0 0
    %1104 = vmatpush.bf16.msra.mxu0 0
    %1105 = vmatpush.bf16.msra.mxu0 %v1093
    %1106 = vmatmul.bf16.gmra.mxu0 %v1096
    %v1107 = vpop.f32.mrf.mxu0
    %v1108 = vadd.f32 0.0, %v1107
    %v1109 = vpop.f32.mrf.mxu0
    %v1110 = vadd.f32 0.0, %v1109
    %1111 = vdwg.mxu0
    %v1112 = vpack.c.bf16 %v1108, %v1108
    %v1113 = vpack.c.bf16 %v1110, %v1110
    %v1116 = vunpack.c.l.b16 %v998
    %v1117 = vunpack.c.l.b16 %v999
    %v1118 = vpack.c.b16 %v1117, %v1116
    %v1122 = vunpack.c.l.b16 %v1112
    %v1123 = vunpack.c.l.b16 %v1113
    %v1124 = vpack.c.b16 %v1123, %v1122
    %v1126 = vld [vmem:[#allocation11] sm:$0xff]
    %v1127 = vld [vmem:[#allocation11 + $0x8] sm:$0xff]
    %v1128 = vld [vmem:[#allocation11 + $0x10] sm:$0xff]
    %v1129 = vld [vmem:[#allocation11 + $0x18] sm:$0xff]
    %v1130 = vld [vmem:[#allocation11 + $0x20] sm:$0xff]
    %v1131 = vld [vmem:[#allocation11 + $0x28] sm:$0xff]
    %v1132 = vld [vmem:[#allocation11 + $0x30] sm:$0xff]
    %v1133 = vld [vmem:[#allocation11 + $0x38] sm:$0xff]
    %v1134 = vld [vmem:[#allocation11 + $0x40] sm:$0xff]
    %v1135 = vld [vmem:[#allocation11 + $0x48] sm:$0xff]
    %v1136 = vld [vmem:[#allocation11 + $0x50] sm:$0xff]
    %v1137 = vld [vmem:[#allocation11 + $0x58] sm:$0xff]
    %v1138 = vld [vmem:[#allocation11 + $0x60] sm:$0xff]
    %v1139 = vld [vmem:[#allocation11 + $0x68] sm:$0xff]
    %v1140 = vld [vmem:[#allocation11 + $0x70] sm:$0xff]
    %v1141 = vld [vmem:[#allocation11 + $0x78] sm:$0xff]
    %v1142 = vld [vmem:[#allocation11 + $0x80] sm:$0xff]
    %v1143 = vld [vmem:[#allocation11 + $0x88] sm:$0xff]
    %v1144 = vld [vmem:[#allocation11 + $0x90] sm:$0xff]
    %v1145 = vld [vmem:[#allocation11 + $0x98] sm:$0xff]
    %v1146 = vld [vmem:[#allocation11 + $0xa0] sm:$0xff]
    %v1147 = vld [vmem:[#allocation11 + $0xa8] sm:$0xff]
    %v1148 = vld [vmem:[#allocation11 + $0xb0] sm:$0xff]
    %v1149 = vld [vmem:[#allocation11 + $0xb8] sm:$0xff]
    %v1150 = vld [vmem:[#allocation11 + $0xc0] sm:$0xff]
    %v1151 = vld [vmem:[#allocation11 + $0xc8] sm:$0xff]
    %v1152 = vld [vmem:[#allocation11 + $0xd0] sm:$0xff]
    %v1153 = vld [vmem:[#allocation11 + $0xd8] sm:$0xff]
    %v1154 = vld [vmem:[#allocation11 + $0xe0] sm:$0xff]
    %v1155 = vld [vmem:[#allocation11 + $0xe8] sm:$0xff]
    %v1156 = vld [vmem:[#allocation11 + $0xf0] sm:$0xff]
    %v1157 = vld [vmem:[#allocation11 + $0xf8] sm:$0xff]
    %v1190 = vunpack.c.l.b16 %v1126
    %v1191 = vunpack.c.h.b16 %v1126
    %v1192 = vunpack.c.l.b16 %v1127
    %v1193 = vunpack.c.h.b16 %v1127
    %v1194 = vunpack.c.l.b16 %v1128
    %v1195 = vunpack.c.h.b16 %v1128
    %v1196 = vunpack.c.l.b16 %v1129
    %v1197 = vunpack.c.h.b16 %v1129
    %v1198 = vunpack.c.l.b16 %v1130
    %v1199 = vunpack.c.h.b16 %v1130
    %v1200 = vunpack.c.l.b16 %v1131
    %v1201 = vunpack.c.h.b16 %v1131
    %v1202 = vunpack.c.l.b16 %v1132
    %v1203 = vunpack.c.h.b16 %v1132
    %v1204 = vunpack.c.l.b16 %v1133
    %v1205 = vunpack.c.h.b16 %v1133
    %v1206 = vunpack.c.l.b16 %v1134
    %v1207 = vunpack.c.h.b16 %v1134
    %v1208 = vunpack.c.l.b16 %v1135
    %v1209 = vunpack.c.h.b16 %v1135
    %v1210 = vunpack.c.l.b16 %v1136
    %v1211 = vunpack.c.h.b16 %v1136
    %v1212 = vunpack.c.l.b16 %v1137
    %v1213 = vunpack.c.h.b16 %v1137
    %v1214 = vunpack.c.l.b16 %v1138
    %v1215 = vunpack.c.h.b16 %v1138
    %v1216 = vunpack.c.l.b16 %v1139
    %v1217 = vunpack.c.h.b16 %v1139
    %v1218 = vunpack.c.l.b16 %v1140
    %v1219 = vunpack.c.h.b16 %v1140
    %v1220 = vunpack.c.l.b16 %v1141
    %v1221 = vunpack.c.h.b16 %v1141
    %v1222 = vunpack.c.l.b16 %v1142
    %v1223 = vunpack.c.h.b16 %v1142
    %v1224 = vunpack.c.l.b16 %v1143
    %v1225 = vunpack.c.h.b16 %v1143
    %v1226 = vunpack.c.l.b16 %v1144
    %v1227 = vunpack.c.h.b16 %v1144
    %v1228 = vunpack.c.l.b16 %v1145
    %v1229 = vunpack.c.h.b16 %v1145
    %v1230 = vunpack.c.l.b16 %v1146
    %v1231 = vunpack.c.h.b16 %v1146
    %v1232 = vunpack.c.l.b16 %v1147
    %v1233 = vunpack.c.h.b16 %v1147
    %v1234 = vunpack.c.l.b16 %v1148
    %v1235 = vunpack.c.h.b16 %v1148
    %v1236 = vunpack.c.l.b16 %v1149
    %v1237 = vunpack.c.h.b16 %v1149
    %v1238 = vunpack.c.l.b16 %v1150
    %v1239 = vunpack.c.h.b16 %v1150
    %v1240 = vunpack.c.l.b16 %v1151
    %v1241 = vunpack.c.h.b16 %v1151
    %v1242 = vunpack.c.l.b16 %v1152
    %v1243 = vunpack.c.h.b16 %v1152
    %v1244 = vunpack.c.l.b16 %v1153
    %v1245 = vunpack.c.h.b16 %v1153
    %v1246 = vunpack.c.l.b16 %v1154
    %v1247 = vunpack.c.h.b16 %v1154
    %v1248 = vunpack.c.l.b16 %v1155
    %v1249 = vunpack.c.h.b16 %v1155
    %v1250 = vunpack.c.l.b16 %v1156
    %v1251 = vunpack.c.h.b16 %v1156
    %v1252 = vunpack.c.l.b16 %v1157
    %v1253 = vunpack.c.h.b16 %v1157
    %v1254 = vpack.c.b16 %v1192, %v1190
    %v1255 = vpack.c.b16 %v1193, %v1191
    %v1256 = vpack.c.b16 %v1196, %v1194
    %v1257 = vpack.c.b16 %v1197, %v1195
    %v1258 = vpack.c.b16 %v1200, %v1198
    %v1259 = vpack.c.b16 %v1201, %v1199
    %v1260 = vpack.c.b16 %v1204, %v1202
    %v1261 = vpack.c.b16 %v1205, %v1203
    %v1262 = vpack.c.b16 %v1208, %v1206
    %v1263 = vpack.c.b16 %v1209, %v1207
    %v1264 = vpack.c.b16 %v1212, %v1210
    %v1265 = vpack.c.b16 %v1213, %v1211
    %v1266 = vpack.c.b16 %v1216, %v1214
    %v1267 = vpack.c.b16 %v1217, %v1215
    %v1268 = vpack.c.b16 %v1220, %v1218
    %v1269 = vpack.c.b16 %v1221, %v1219
    %v1270 = vpack.c.b16 %v1224, %v1222
    %v1271 = vpack.c.b16 %v1225, %v1223
    %v1272 = vpack.c.b16 %v1228, %v1226
    %v1273 = vpack.c.b16 %v1229, %v1227
    %v1274 = vpack.c.b16 %v1232, %v1230
    %v1275 = vpack.c.b16 %v1233, %v1231
    %v1276 = vpack.c.b16 %v1236, %v1234
    %v1277 = vpack.c.b16 %v1237, %v1235
    %v1278 = vpack.c.b16 %v1240, %v1238
    %v1279 = vpack.c.b16 %v1241, %v1239
    %v1280 = vpack.c.b16 %v1244, %v1242
    %v1281 = vpack.c.b16 %v1245, %v1243
    %v1282 = vpack.c.b16 %v1248, %v1246
    %v1283 = vpack.c.b16 %v1249, %v1247
    %v1284 = vpack.c.b16 %v1252, %v1250
    %v1285 = vpack.c.b16 %v1253, %v1251
    %1318 = vmatpush.bf16.msra.mxu0 %v1268
    %1319 = vmatpush.bf16.msra.mxu0 %v1266
    %1320 = vmatpush.bf16.msra.mxu0 %v1264
    %1321 = vmatpush.bf16.msra.mxu0 %v1262
    %1322 = vmatpush.bf16.msra.mxu0 %v1260
    %1323 = vmatpush.bf16.msra.mxu0 %v1258
    %1324 = vmatpush.bf16.msra.mxu0 %v1256
    %1325 = vmatpush.bf16.msra.mxu0 %v1254
    %1326 = vmatmul.bf16.gmra.mxu0 %v1118
    %v1327 = vpop.f32.mrf.mxu0
    %v1328 = vadd.f32 0.0, %v1327
    %v1329 = vpop.f32.mrf.mxu0
    %v1330 = vadd.f32 0.0, %v1329
    %1331 = vdwg.mxu0
    %1332 = vmatpush.bf16.msra.mxu0 %v1284
    %1333 = vmatpush.bf16.msra.mxu0 %v1282
    %1334 = vmatpush.bf16.msra.mxu0 %v1280
    %1335 = vmatpush.bf16.msra.mxu0 %v1278
    %1336 = vmatpush.bf16.msra.mxu0 %v1276
    %1337 = vmatpush.bf16.msra.mxu0 %v1274
    %1338 = vmatpush.bf16.msra.mxu0 %v1272
    %1339 = vmatpush.bf16.msra.mxu0 %v1270
    %1340 = vmatmul.bf16.gmra.mxu0 %v1124
    %v1341 = vpop.f32.mrf.mxu0
    %v1342 = vadd.f32 %v1328, %v1341
    %v1343 = vpop.f32.mrf.mxu0
    %v1344 = vadd.f32 %v1330, %v1343
    %1345 = vdwg.mxu0
    %1346 = vmatpush.bf16.msra.mxu0 %v1269
    %1347 = vmatpush.bf16.msra.mxu0 %v1267
    %1348 = vmatpush.bf16.msra.mxu0 %v1265
    %1349 = vmatpush.bf16.msra.mxu0 %v1263
    %1350 = vmatpush.bf16.msra.mxu0 %v1261
    %1351 = vmatpush.bf16.msra.mxu0 %v1259
    %1352 = vmatpush.bf16.msra.mxu0 %v1257
    %1353 = vmatpush.bf16.msra.mxu0 %v1255
    %1354 = vmatmul.bf16.gmra.mxu0 %v1118
    %v1355 = vpop.f32.mrf.mxu0
    %v1356 = vadd.f32 0.0, %v1355
    %v1357 = vpop.f32.mrf.mxu0
    %v1358 = vadd.f32 0.0, %v1357
    %1359 = vdwg.mxu0
    %1360 = vmatpush.bf16.msra.mxu0 %v1285
    %1361 = vmatpush.bf16.msra.mxu0 %v1283
    %1362 = vmatpush.bf16.msra.mxu0 %v1281
    %1363 = vmatpush.bf16.msra.mxu0 %v1279
    %1364 = vmatpush.bf16.msra.mxu0 %v1277
    %1365 = vmatpush.bf16.msra.mxu0 %v1275
    %1366 = vmatpush.bf16.msra.mxu0 %v1273
    %1367 = vmatpush.bf16.msra.mxu0 %v1271
    %1368 = vmatmul.bf16.gmra.mxu0 %v1124
    %v1369 = vpop.f32.mrf.mxu0
    %v1370 = vadd.f32 %v1356, %v1369
    %v1371 = vpop.f32.mrf.mxu0
    %v1372 = vadd.f32 %v1358, %v1371
    %1373 = vdwg.mxu0
    %1374 = vst [vmem:[#allocation13] sm:$0xff] %v1342
    %1375 = vst [vmem:[#allocation13 + $0x8] sm:$0xff] %v1370
    %1376 = vst [vmem:[#allocation13 + $0x10] sm:$0xff] %v1344
    %1377 = vst [vmem:[#allocation13 + $0x18] sm:$0xff] %v1372
    // Predicated region
    $region50: #{tpu_custom_call.1} parent=1 // pred_check
      _
    $region51: #{tpu_custom_call.1} parent=1 // pred_check_branch
      %1379 = sbr.rel (0) target = $region53
    $region52: #{tpu_custom_call.1} parent=1 // pred_region
      %1381 = vsyncadd [#allocation4], 0
      %s1382 = sshll.u32 [#allocation13], 4
      %s1383 = int_to_ptr.vmem [resolvable:$true] %s1382
      %s1384 = sshll.u32 %s6, 4
      %s1385 = int_to_ptr.hbm [resolvable:$true] %s1384
      %1390 = dma.vmem_to_hbm [thread:$0]  %s1383, 512, %s1385, [#allocation4], 256, 256, 16
    $region53: #{tpu_custom_call.1} parent=1 // pred_fallthru
      _
    // Predicated region
    $region54: #{tpu_custom_call.1} parent=1 // pred_check
      _
    $region55: #{tpu_custom_call.1} parent=1 // pred_check_branch
      %1392 = sbr.rel (0) target = $region57
    $region56: #{tpu_custom_call.1} parent=1 // pred_region
      %1394 = dma.done [#allocation4], 512
    $region57: #{tpu_custom_call.1} parent=1 // pred_fallthru
      _
    %1395 = vsyncpa [#allocation3], 1
    %1396 = vsyncpa [#allocation6], 1
    %1397 = vsyncpa [#allocation9], 1
    %1398 = vsyncpa [#allocation12], 1
    %1399 = vsyncpa [#allocation4], 1

</llo_original>
